<compile_context>
chip_gen: v7x
topology: tpu7x:2x2x1
jax: 0.10.0
libtpu: 0.0.40
codegen_flags: <defaults>
</compile_context>

<pallas_src>
import functools

import jax
import jax.numpy as jnp
from jax.experimental import pallas as pl
from jax.experimental.pallas import tpu as pltpu

LANE = 128
LOG_STD_MIN = -20.0
LOG_STD_MAX = 2.0


# ----------------------------------------------------------------------------
# Kernel
# ----------------------------------------------------------------------------
def _actor_critic_kernel(max_action, s_dim, a_dim,
                         xin_ref,
                         w1_ref, b1_ref, w2_ref, b2_ref,
                         whead_ref, bhead_ref,
                         wc1_ref, bc1_ref, wc2_ref, bc2_ref,
                         wc3_ref, bc3_ref,
                         out_ref):
    tb = xin_ref.shape[0]
    cdt = w1_ref.dtype            # matmul operand dtype (f32 or bf16)

    xin = xin_ref[...]            # [TB, 128] f32 slab: [state | eps | zeros]

    def mm(a, w_ref):             # MXU matmul, f32 accumulation
        return jnp.dot(a.astype(cdt), w_ref[...],
                       preferred_element_type=jnp.float32)

    # ---- Actor trunk ----
    # w1 is zero-padded on the eps/zero rows of the slab, so one K=128 push
    # computes exactly state @ W1.
    h1 = jnp.maximum(mm(xin, w1_ref) + b1_ref[...], 0.0)
    h2 = jnp.maximum(mm(h1, w2_ref) + b2_ref[...], 0.0)

    # ---- Fused actor heads: cols [0:A)=mean head, [A:2A)=log_std head ----
    head = mm(h2, whead_ref) + bhead_ref[...]          # [TB, 128]
    mu = max_action * jnp.tanh(head[:, :a_dim])
    log_std = jnp.clip(head[:, a_dim:2 * a_dim], LOG_STD_MIN, LOG_STD_MAX)
    std = jnp.exp(log_std)

    # Normal(mu, std).sample() == mu + std * eps   (reparameterized draw)
    eps = xin[:, s_dim:s_dim + a_dim]
    action = mu + std * eps

    # ---- Critic on concat(state, action): lane-dense [TB, 128] slab and a
    #      single K=128 matmul against the zero-padded [128, H] weight.
    #      Lanes >= s_dim + a_dim of xin are already zero, so reuse them. ----
    ca = jnp.concatenate(
        [xin[:, :s_dim], action, xin[:, s_dim + a_dim:]], axis=-1)
    c1 = jnp.maximum(mm(ca, wc1_ref) + bc1_ref[...], 0.0)
    c2 = jnp.maximum(mm(c1, wc2_ref) + bc2_ref[...], 0.0)
    q = mm(c2, wc3_ref) + bc3_ref[...]                  # [TB, 1]

    # ---- Single lane-dense output slab: [action | mean | std | q | zeros] ----
    out_ref[...] = jnp.concatenate(
        [action, mu, std, q,
         jnp.zeros((tb, LANE - 3 * a_dim - 1), jnp.float32)], axis=-1)


# ----------------------------------------------------------------------------
# Parameters
# ----------------------------------------------------------------------------
def init_params(key, state_dim, action_dim, hidden_dim=256):
    """PyTorch-style uniform(+/- 1/sqrt(fan_in)) init, logical [in, out] layout."""
    ks = jax.random.split(key, 8)

    def lin(k, fan_in, fan_out):
        kw, kb = jax.random.split(k)
        bound = 1.0 / float(fan_in) ** 0.5
        w = jax.random.uniform(kw, (fan_in, fan_out), jnp.float32, -bound, bound)
        b = jax.random.uniform(kb, (1, fan_out), jnp.float32, -bound, bound)
        return w, b

    p = {}
    p["w1"], p["b1"] = lin(ks[0], state_dim, hidden_dim)
    p["w2"], p["b2"] = lin(ks[1], hidden_dim, hidden_dim)
    p["wmu"], p["bmu"] = lin(ks[2], hidden_dim, action_dim)
    p["wls"], p["bls"] = lin(ks[3], hidden_dim, action_dim)
    p["wc1"], p["bc1"] = lin(ks[4], state_dim + action_dim, hidden_dim)
    p["wc2"], p["bc2"] = lin(ks[5], hidden_dim, hidden_dim)
    p["wc3"], p["bc3"] = lin(ks[6], hidden_dim, 1)
    return p


def pack_params(p, state_dim, action_dim, compute_dtype=jnp.float32):
    """Pad/fuse weights into the kernel's lane-dense layout.

    compute_dtype=jnp.bfloat16 is recommended on v6e/v7x for MXU throughput;
    biases stay f32 (added post-matmul in f32).
    """
    hidden = p["w1"].shape[1]
    cdt = compute_dtype

    w1p = jnp.zeros((LANE, hidden), cdt).at[:state_dim].set(
        p["w1"].astype(cdt))
    wc1p = jnp.zeros((LANE, hidden), cdt).at[:state_dim + action_dim].set(
        p["wc1"].astype(cdt))

    whead = jnp.zeros((hidden, LANE), cdt)
    whead = whead.at[:, :action_dim].set(p["wmu"].astype(cdt))
    whead = whead.at[:, action_dim:2 * action_dim].set(p["wls"].astype(cdt))
    bhead = jnp.zeros((1, LANE), jnp.float32)
    bhead = bhead.at[:, :action_dim].set(p["bmu"])
    bhead = bhead.at[:, action_dim:2 * action_dim].set(p["bls"])

    return dict(
        w1=w1p, b1=p["b1"],
        w2=p["w2"].astype(cdt), b2=p["b2"],
        whead=whead, bhead=bhead,
        wc1=wc1p, bc1=p["bc1"],
        wc2=p["wc2"].astype(cdt), bc2=p["bc2"],
        wc3=p["wc3"].astype(cdt), bc3=p["bc3"],
    )


# ----------------------------------------------------------------------------
# Wrapper
# ----------------------------------------------------------------------------
@functools.partial(jax.jit,
                   static_argnames=("state_dim", "action_dim", "max_action",
                                    "block_b"))
def actor_critic_forward(packed, state, eps, *, state_dim, action_dim,
                         max_action, block_b=128):
    """Returns (action, (mean, std), q) — `(mean, std)` stands in for Normal()."""
    assert state_dim + action_dim <= LANE and 3 * action_dim + 1 <= LANE
    B = state.shape[0]
    # Adapt the batch tile to the actual batch: round up to a sublane multiple
    # (8), cap at the requested block so large batches still pipeline.
    tb = min(block_b, max(8, ((B + 7) // 8) * 8))
    b_pad = pl.cdiv(B, tb) * tb
    hidden = packed["w2"].shape[0]

    # Lane-dense input slab: [state | eps | zeros], padded batch rows are zero.
    xin = jnp.zeros((b_pad, LANE), jnp.float32)
    xin = xin.at[:B, :state_dim].set(state.astype(jnp.float32))
    xin = xin.at[:B, state_dim:state_dim + action_dim].set(
        eps.astype(jnp.float32))

    order = ["w1", "b1", "w2", "b2", "whead", "bhead",
             "wc1", "bc1", "wc2", "bc2", "wc3", "bc3"]
    weights = [packed[k] for k in order]

    x_spec = pl.BlockSpec((tb, LANE), lambda i: (i, 0))
    # Constant index maps -> weights DMA'd once, resident across grid steps.
    w_specs = [pl.BlockSpec(w.shape, lambda i: (0, 0)) for w in weights]
    out_spec = pl.BlockSpec((tb, LANE), lambda i: (i, 0))

    # Advisory cost hint for the XLA scheduler around the custom call.
    flops = 2 * b_pad * (LANE * hidden + hidden * hidden + hidden * LANE
                         + LANE * hidden + hidden * hidden + hidden)
    weight_bytes = sum(int(w.size) * w.dtype.itemsize for w in weights)
    cost = pl.CostEstimate(
        flops=int(flops),
        transcendentals=int(2 * b_pad * action_dim),
        bytes_accessed=int(2 * b_pad * LANE * 4 + weight_bytes))

    kernel = functools.partial(_actor_critic_kernel, float(max_action),
                               state_dim, action_dim)
    out = pl.pallas_call(
        kernel,
        grid=(b_pad // tb,),
        in_specs=[x_spec] + w_specs,
        out_specs=out_spec,
        out_shape=jax.ShapeDtypeStruct((b_pad, LANE), jnp.float32),
        cost_estimate=cost,
        compiler_params=pltpu.CompilerParams(
            dimension_semantics=("parallel",)),
    )(xin, *weights)

    action = out[:B, :action_dim]
    mean = out[:B, action_dim:2 * action_dim]
    std = out[:B, 2 * action_dim:3 * action_dim]
    q = out[:B, 3 * action_dim:3 * action_dim + 1]
    return action, (mean, std), q


# ----------------------------------------------------------------------------
# Pure-JAX reference (logical params) for correctness checking
# ----------------------------------------------------------------------------
def _reference_forward(p, state, eps, max_action):
    h1 = jnp.maximum(state @ p["w1"] + p["b1"], 0.0)
    h2 = jnp.maximum(h1 @ p["w2"] + p["b2"], 0.0)
    mu = max_action * jnp.tanh(h2 @ p["wmu"] + p["bmu"])
    std = jnp.exp(jnp.clip(h2 @ p["wls"] + p["bls"], LOG_STD_MIN, LOG_STD_MAX))
    action = mu + std * eps
    sa = jnp.concatenate([state, action], axis=-1)
    c1 = jnp.maximum(sa @ p["wc1"] + p["bc1"], 0.0)
    c2 = jnp.maximum(c1 @ p["wc2"] + p["bc2"], 0.0)
    q = c2 @ p["wc3"] + p["bc3"]
    return action, (mu, std), q


if __name__ == "__main__":
    B, STATE_DIM, ACTION_DIM, HIDDEN_DIM = 2, 16, 4, 256
    MAX_ACTION = 1.0

    key = jax.random.PRNGKey(0)
    k_param, k_state, k_eps = jax.random.split(key, 3)

    params = init_params(k_param, STATE_DIM, ACTION_DIM, HIDDEN_DIM)
    state = jax.random.normal(k_state, (B, STATE_DIM), jnp.float32)
    # Reparameterized Gaussian noise drawn on the host (deterministic); the
    # sampling arithmetic (mean + std * eps) runs inside the kernel.
    # TODO(synk): optionally generate eps in-kernel via pltpu.prng_* when
    # bitwise reproducibility against host-side jax.random is not required.
    eps = jax.random.normal(k_eps, (B, ACTION_DIM), jnp.float32)

    # --- f32 matmul path (exact-ish; used for the correctness assert) ---
    packed_f32 = pack_params(params, STATE_DIM, ACTION_DIM, jnp.float32)
    action, (mean, std), q = actor_critic_forward(
        packed_f32, state, eps, state_dim=STATE_DIM, action_dim=ACTION_DIM,
        max_action=MAX_ACTION)
    jax.block_until_ready((action, mean, std, q))

    ref_action, (ref_mean, ref_std), ref_q = _reference_forward(
        params, state, eps, MAX_ACTION)
    assert jnp.allclose(action, ref_action, atol=1e-4)
    assert jnp.allclose(mean, ref_mean, atol=1e-4)
    assert jnp.allclose(std, ref_std, atol=1e-4)
    assert jnp.allclose(q, ref_q, atol=1e-4)

    # --- bf16 matmul path (v6e/v7x throughput mode): smoke test only ---
    packed_bf16 = pack_params(params, STATE_DIM, ACTION_DIM, jnp.bfloat16)
    a16, (m16, s16), q16 = actor_critic_forward(
        packed_bf16, state, eps, state_dim=STATE_DIM, action_dim=ACTION_DIM,
        max_action=MAX_ACTION)
    jax.block_until_ready((a16, m16, s16, q16))
    assert bool(jnp.isfinite(a16).all() & jnp.isfinite(m16).all()
                & jnp.isfinite(s16).all() & jnp.isfinite(q16).all())

    print("KERNEL_OK")
</pallas_src>

<mosaic_0001>
module attributes {stable_mosaic.version = 11 : i64} {
  func.func @_actor_critic_kernel(%arg0: i32, %arg1: memref<8x128xf32, #tpu.memory_space<vmem>>, %arg2: memref<128x256xf32, #tpu.memory_space<vmem>>, %arg3: memref<1x256xf32, #tpu.memory_space<vmem>>, %arg4: memref<256x256xf32, #tpu.memory_space<vmem>>, %arg5: memref<1x256xf32, #tpu.memory_space<vmem>>, %arg6: memref<256x128xf32, #tpu.memory_space<vmem>>, %arg7: memref<1x128xf32, #tpu.memory_space<vmem>>, %arg8: memref<128x256xf32, #tpu.memory_space<vmem>>, %arg9: memref<1x256xf32, #tpu.memory_space<vmem>>, %arg10: memref<256x256xf32, #tpu.memory_space<vmem>>, %arg11: memref<1x256xf32, #tpu.memory_space<vmem>>, %arg12: memref<256x1xf32, #tpu.memory_space<vmem>>, %arg13: memref<1x1xf32, #tpu.memory_space<vmem>>, %arg14: memref<8x128xf32, #tpu.memory_space<vmem>>) attributes {dimension_semantics = [#tpu.dimension_semantics<parallel>], iteration_bounds = array<i64: 1>, scalar_prefetch = 0 : i64, scratch_operands = 0 : i64, tpu.core_type = #tpu.core_type<tc>, window_params = [{transform_indices = @transform_0, window_bounds = array<i64: 8, 128>}, {pipeline_mode = #tpu.pipeline_mode<synchronous>, transform_indices = @transform_1, window_bounds = array<i64: 128, 256>}, {pipeline_mode = #tpu.pipeline_mode<synchronous>, transform_indices = @transform_2, window_bounds = array<i64: 1, 256>}, {pipeline_mode = #tpu.pipeline_mode<synchronous>, transform_indices = @transform_3, window_bounds = array<i64: 256, 256>}, {pipeline_mode = #tpu.pipeline_mode<synchronous>, transform_indices = @transform_4, window_bounds = array<i64: 1, 256>}, {pipeline_mode = #tpu.pipeline_mode<synchronous>, transform_indices = @transform_5, window_bounds = array<i64: 256, 128>}, {pipeline_mode = #tpu.pipeline_mode<synchronous>, transform_indices = @transform_6, window_bounds = array<i64: 1, 128>}, {pipeline_mode = #tpu.pipeline_mode<synchronous>, transform_indices = @transform_7, window_bounds = array<i64: 128, 256>}, {pipeline_mode = #tpu.pipeline_mode<synchronous>, transform_indices = @transform_8, window_bounds = array<i64: 1, 256>}, {pipeline_mode = #tpu.pipeline_mode<synchronous>, transform_indices = @transform_9, window_bounds = array<i64: 256, 256>}, {pipeline_mode = #tpu.pipeline_mode<synchronous>, transform_indices = @transform_10, window_bounds = array<i64: 1, 256>}, {pipeline_mode = #tpu.pipeline_mode<synchronous>, transform_indices = @transform_11, window_bounds = array<i64: 256, 1>}, {pipeline_mode = #tpu.pipeline_mode<synchronous>, transform_indices = @transform_12, window_bounds = array<i64: 1, 1>}, {transform_indices = @transform_13, window_bounds = array<i64: 8, 128>}]} {
    %c0 = arith.constant 0 : index
    %c0_0 = arith.constant 0 : index
    %0 = vector.load %arg1[%c0, %c0_0] : memref<8x128xf32, #tpu.memory_space<vmem>>, vector<8x128xf32>
    %c0_1 = arith.constant 0 : index
    %c0_2 = arith.constant 0 : index
    %1 = vector.load %arg2[%c0_1, %c0_2] : memref<128x256xf32, #tpu.memory_space<vmem>>, vector<128x256xf32>
    %cst = arith.constant dense<0.000000e+00> : vector<8x256xf32>
    %2 = tpu.matmul %0, %1, %cst {dimension_numbers = #tpu.dot_dimension_numbers<[1], [0], [0], [1], [0, 0, 1, 1], [], []>} : vector<8x128xf32>, vector<128x256xf32>, vector<8x256xf32> -> vector<8x256xf32>
    %c0_3 = arith.constant 0 : index
    %c0_4 = arith.constant 0 : index
    %3 = vector.load %arg3[%c0_3, %c0_4] : memref<1x256xf32, #tpu.memory_space<vmem>>, vector<1x256xf32>
    %4 = vector.broadcast %3 : vector<1x256xf32> to vector<8x256xf32>
    %5 = arith.addf %2, %4 : vector<8x256xf32>
    %cst_5 = arith.constant 0.000000e+00 : f32
    %6 = vector.broadcast %cst_5 : f32 to vector<8x256xf32>
    %7 = arith.maximumf %5, %6 : vector<8x256xf32>
    %c0_6 = arith.constant 0 : index
    %c0_7 = arith.constant 0 : index
    %8 = vector.load %arg4[%c0_6, %c0_7] : memref<256x256xf32, #tpu.memory_space<vmem>>, vector<256x256xf32>
    %cst_8 = arith.constant dense<0.000000e+00> : vector<8x256xf32>
    %9 = tpu.matmul %7, %8, %cst_8 {dimension_numbers = #tpu.dot_dimension_numbers<[1], [0], [0], [1], [0, 0, 1, 1], [], []>} : vector<8x256xf32>, vector<256x256xf32>, vector<8x256xf32> -> vector<8x256xf32>
    %c0_9 = arith.constant 0 : index
    %c0_10 = arith.constant 0 : index
    %10 = vector.load %arg5[%c0_9, %c0_10] : memref<1x256xf32, #tpu.memory_space<vmem>>, vector<1x256xf32>
    %11 = vector.broadcast %10 : vector<1x256xf32> to vector<8x256xf32>
    %12 = arith.addf %9, %11 : vector<8x256xf32>
    %cst_11 = arith.constant 0.000000e+00 : f32
    %13 = vector.broadcast %cst_11 : f32 to vector<8x256xf32>
    %14 = arith.maximumf %12, %13 : vector<8x256xf32>
    %c0_12 = arith.constant 0 : index
    %c0_13 = arith.constant 0 : index
    %15 = vector.load %arg6[%c0_12, %c0_13] : memref<256x128xf32, #tpu.memory_space<vmem>>, vector<256x128xf32>
    %cst_14 = arith.constant dense<0.000000e+00> : vector<8x128xf32>
    %16 = tpu.matmul %14, %15, %cst_14 {dimension_numbers = #tpu.dot_dimension_numbers<[1], [0], [0], [1], [0, 0, 1, 1], [], []>} : vector<8x256xf32>, vector<256x128xf32>, vector<8x128xf32> -> vector<8x128xf32>
    %c0_15 = arith.constant 0 : index
    %c0_16 = arith.constant 0 : index
    %17 = vector.load %arg7[%c0_15, %c0_16] : memref<1x128xf32, #tpu.memory_space<vmem>>, vector<1x128xf32>
    %18 = vector.broadcast %17 : vector<1x128xf32> to vector<8x128xf32>
    %19 = arith.addf %16, %18 : vector<8x128xf32>
    %20 = vector.extract_strided_slice %19 {offsets = [0, 0], sizes = [8, 4], strides = [1, 1]} : vector<8x128xf32> to vector<8x4xf32>
    %21 = math.tanh %20 : vector<8x4xf32>
    %cst_17 = arith.constant 1.000000e+00 : f32
    %22 = vector.broadcast %cst_17 : f32 to vector<8x4xf32>
    %23 = arith.mulf %22, %21 : vector<8x4xf32>
    %24 = vector.extract_strided_slice %19 {offsets = [0, 4], sizes = [8, 4], strides = [1, 1]} : vector<8x128xf32> to vector<8x4xf32>
    %cst_18 = arith.constant -2.000000e+01 : f32
    %cst_19 = arith.constant 2.000000e+00 : f32
    %25 = vector.broadcast %cst_18 : f32 to vector<8x4xf32>
    %26 = arith.maximumf %25, %24 : vector<8x4xf32>
    %27 = vector.broadcast %cst_19 : f32 to vector<8x4xf32>
    %28 = arith.minimumf %27, %26 : vector<8x4xf32>
    %29 = math.exp %28 : vector<8x4xf32>
    %30 = vector.extract_strided_slice %0 {offsets = [0, 16], sizes = [8, 4], strides = [1, 1]} : vector<8x128xf32> to vector<8x4xf32>
    %31 = arith.mulf %29, %30 : vector<8x4xf32>
    %32 = arith.addf %23, %31 : vector<8x4xf32>
    %33 = vector.extract_strided_slice %0 {offsets = [0, 0], sizes = [8, 16], strides = [1, 1]} : vector<8x128xf32> to vector<8x16xf32>
    %34 = vector.extract_strided_slice %0 {offsets = [0, 20], sizes = [8, 108], strides = [1, 1]} : vector<8x128xf32> to vector<8x108xf32>
    %35 = tpu.concatenate %33, %32, %34 in 1 : vector<8x16xf32>, vector<8x4xf32>, vector<8x108xf32> -> vector<8x128xf32>
    %c0_20 = arith.constant 0 : index
    %c0_21 = arith.constant 0 : index
    %36 = vector.load %arg8[%c0_20, %c0_21] : memref<128x256xf32, #tpu.memory_space<vmem>>, vector<128x256xf32>
    %cst_22 = arith.constant dense<0.000000e+00> : vector<8x256xf32>
    %37 = tpu.matmul %35, %36, %cst_22 {dimension_numbers = #tpu.dot_dimension_numbers<[1], [0], [0], [1], [0, 0, 1, 1], [], []>} : vector<8x128xf32>, vector<128x256xf32>, vector<8x256xf32> -> vector<8x256xf32>
    %c0_23 = arith.constant 0 : index
    %c0_24 = arith.constant 0 : index
    %38 = vector.load %arg9[%c0_23, %c0_24] : memref<1x256xf32, #tpu.memory_space<vmem>>, vector<1x256xf32>
    %39 = vector.broadcast %38 : vector<1x256xf32> to vector<8x256xf32>
    %40 = arith.addf %37, %39 : vector<8x256xf32>
    %cst_25 = arith.constant 0.000000e+00 : f32
    %41 = vector.broadcast %cst_25 : f32 to vector<8x256xf32>
    %42 = arith.maximumf %40, %41 : vector<8x256xf32>
    %c0_26 = arith.constant 0 : index
    %c0_27 = arith.constant 0 : index
    %43 = vector.load %arg10[%c0_26, %c0_27] : memref<256x256xf32, #tpu.memory_space<vmem>>, vector<256x256xf32>
    %cst_28 = arith.constant dense<0.000000e+00> : vector<8x256xf32>
    %44 = tpu.matmul %42, %43, %cst_28 {dimension_numbers = #tpu.dot_dimension_numbers<[1], [0], [0], [1], [0, 0, 1, 1], [], []>} : vector<8x256xf32>, vector<256x256xf32>, vector<8x256xf32> -> vector<8x256xf32>
    %c0_29 = arith.constant 0 : index
    %c0_30 = arith.constant 0 : index
    %45 = vector.load %arg11[%c0_29, %c0_30] : memref<1x256xf32, #tpu.memory_space<vmem>>, vector<1x256xf32>
    %46 = vector.broadcast %45 : vector<1x256xf32> to vector<8x256xf32>
    %47 = arith.addf %44, %46 : vector<8x256xf32>
    %cst_31 = arith.constant 0.000000e+00 : f32
    %48 = vector.broadcast %cst_31 : f32 to vector<8x256xf32>
    %49 = arith.maximumf %47, %48 : vector<8x256xf32>
    %c0_32 = arith.constant 0 : index
    %c0_33 = arith.constant 0 : index
    %50 = vector.load %arg12[%c0_32, %c0_33] : memref<256x1xf32, #tpu.memory_space<vmem>>, vector<256x1xf32>
    %cst_34 = arith.constant dense<0.000000e+00> : vector<8x1xf32>
    %51 = tpu.matmul %49, %50, %cst_34 {dimension_numbers = #tpu.dot_dimension_numbers<[1], [0], [0], [1], [0, 0, 1, 1], [], []>} : vector<8x256xf32>, vector<256x1xf32>, vector<8x1xf32> -> vector<8x1xf32>
    %c0_35 = arith.constant 0 : index
    %c0_36 = arith.constant 0 : index
    %52 = vector.load %arg13[%c0_35, %c0_36] : memref<1x1xf32, #tpu.memory_space<vmem>>, vector<1x1xf32>
    %53 = vector.broadcast %52 : vector<1x1xf32> to vector<8x1xf32>
    %54 = arith.addf %51, %53 : vector<8x1xf32>
    %cst_37 = arith.constant 0.000000e+00 : f32
    %55 = vector.broadcast %cst_37 : f32 to vector<8x115xf32>
    %56 = tpu.concatenate %32, %23, %29, %54, %55 in 1 : vector<8x4xf32>, vector<8x4xf32>, vector<8x4xf32>, vector<8x1xf32>, vector<8x115xf32> -> vector<8x128xf32>
    %c0_38 = arith.constant 0 : index
    %c0_39 = arith.constant 0 : index
    %57 = vector.load %arg14[%c0_38, %c0_39] : memref<8x128xf32, #tpu.memory_space<vmem>>, vector<8x128xf32>
    tpu.vector_store %arg14[%c0_38, %c0_39], %56 {strides = array<i32>} : memref<8x128xf32, #tpu.memory_space<vmem>>, vector<8x128xf32>,
    return
  }
  func.func @transform_0(%arg0: i32) -> (i32, i32) {
    %c0_i32 = arith.constant 0 : i32
    %c0_i32_0 = arith.constant 0 : i32
    return %arg0, %c0_i32 : i32, i32
  }
  func.func @transform_1(%arg0: i32) -> (i32, i32) {
    %c0_i32 = arith.constant 0 : i32
    %c0_i32_0 = arith.constant 0 : i32
    %c0_i32_1 = arith.constant 0 : i32
    return %c0_i32, %c0_i32_0 : i32, i32
  }
  func.func @transform_2(%arg0: i32) -> (i32, i32) {
    %c0_i32 = arith.constant 0 : i32
    %c0_i32_0 = arith.constant 0 : i32
    %c0_i32_1 = arith.constant 0 : i32
    return %c0_i32, %c0_i32_0 : i32, i32
  }
  func.func @transform_3(%arg0: i32) -> (i32, i32) {
    %c0_i32 = arith.constant 0 : i32
    %c0_i32_0 = arith.constant 0 : i32
    %c0_i32_1 = arith.constant 0 : i32
    return %c0_i32, %c0_i32_0 : i32, i32
  }
  func.func @transform_4(%arg0: i32) -> (i32, i32) {
    %c0_i32 = arith.constant 0 : i32
    %c0_i32_0 = arith.constant 0 : i32
    %c0_i32_1 = arith.constant 0 : i32
    return %c0_i32, %c0_i32_0 : i32, i32
  }
  func.func @transform_5(%arg0: i32) -> (i32, i32) {
    %c0_i32 = arith.constant 0 : i32
    %c0_i32_0 = arith.constant 0 : i32
    %c0_i32_1 = arith.constant 0 : i32
    return %c0_i32, %c0_i32_0 : i32, i32
  }
  func.func @transform_6(%arg0: i32) -> (i32, i32) {
    %c0_i32 = arith.constant 0 : i32
    %c0_i32_0 = arith.constant 0 : i32
    %c0_i32_1 = arith.constant 0 : i32
    return %c0_i32, %c0_i32_0 : i32, i32
  }
  func.func @transform_7(%arg0: i32) -> (i32, i32) {
    %c0_i32 = arith.constant 0 : i32
    %c0_i32_0 = arith.constant 0 : i32
    %c0_i32_1 = arith.constant 0 : i32
    return %c0_i32, %c0_i32_0 : i32, i32
  }
  func.func @transform_8(%arg0: i32) -> (i32, i32) {
    %c0_i32 = arith.constant 0 : i32
    %c0_i32_0 = arith.constant 0 : i32
    %c0_i32_1 = arith.constant 0 : i32
    return %c0_i32, %c0_i32_0 : i32, i32
  }
  func.func @transform_9(%arg0: i32) -> (i32, i32) {
    %c0_i32 = arith.constant 0 : i32
    %c0_i32_0 = arith.constant 0 : i32
    %c0_i32_1 = arith.constant 0 : i32
    return %c0_i32, %c0_i32_0 : i32, i32
  }
  func.func @transform_10(%arg0: i32) -> (i32, i32) {
    %c0_i32 = arith.constant 0 : i32
    %c0_i32_0 = arith.constant 0 : i32
    %c0_i32_1 = arith.constant 0 : i32
    return %c0_i32, %c0_i32_0 : i32, i32
  }
  func.func @transform_11(%arg0: i32) -> (i32, i32) {
    %c0_i32 = arith.constant 0 : i32
    %c0_i32_0 = arith.constant 0 : i32
    %c0_i32_1 = arith.constant 0 : i32
    return %c0_i32, %c0_i32_0 : i32, i32
  }
  func.func @transform_12(%arg0: i32) -> (i32, i32) {
    %c0_i32 = arith.constant 0 : i32
    %c0_i32_0 = arith.constant 0 : i32
    %c0_i32_1 = arith.constant 0 : i32
    return %c0_i32, %c0_i32_0 : i32, i32
  }
  func.func @transform_13(%arg0: i32) -> (i32, i32) {
    %c0_i32 = arith.constant 0 : i32
    %c0_i32_0 = arith.constant 0 : i32
    return %arg0, %c0_i32 : i32, i32
  }
}

</mosaic_0001>

<llo_original>
// kernel: actor_critic_forward.1
$region0: #{actor_critic_forward.1}
  #allocation0 [shape = 'u32[]', space=smem, size = 0x4, offset = 0x4, fixed_abs, tag = 'smem constant byte address 0x4 - core index']
  #allocation1 [shape = 'u32[144,128]{1,0:T(1,128)}', space=vmem, size = 0x12000, scoped, tag = 'internal scratch']
  #allocation2 [shape = 'f32[1,1]{1,0:T(1,128)S(1)}', space=vmem, size = 0x200, scoped, tag = 'scoped memory for actor_critic_forward.1']
  %s0 = inlined_call_operand.vmem [shape: f32[8,128], index: 0, kind: input, shape index: {}]
  %s1 = inlined_call_operand.vmem [shape: f32[128,256], index: 1, kind: input, shape index: {}]
  %s2 = inlined_call_operand.vmem [shape: f32[1,256], index: 2, kind: input, shape index: {}]
  %s3 = inlined_call_operand.hbm [shape: f32[256,256], index: 3, kind: input, shape index: {}]
  %s4 = inlined_call_operand.vmem [shape: f32[1,256], index: 4, kind: input, shape index: {}]
  %s5 = inlined_call_operand.hbm [shape: f32[256,128], index: 5, kind: input, shape index: {}]
  %s6 = inlined_call_operand.vmem [shape: f32[1,128], index: 6, kind: input, shape index: {}]
  %s7 = inlined_call_operand.hbm [shape: f32[128,256], index: 7, kind: input, shape index: {}]
  %s8 = inlined_call_operand.vmem [shape: f32[1,256], index: 8, kind: input, shape index: {}]
  %s9 = inlined_call_operand.hbm [shape: f32[256,256], index: 9, kind: input, shape index: {}]
  %s10 = inlined_call_operand.vmem [shape: f32[1,256], index: 10, kind: input, shape index: {}]
  %s11 = inlined_call_operand.vmem [shape: f32[256,1], index: 11, kind: input, shape index: {}]
  %s12 = inlined_call_operand.<no memory space> [shape: f32[1,1], index: 12, kind: input, shape index: {}]
  %s13 = inlined_call_operand.vmem [shape: f32[8,128], index: 13, kind: output, shape index: {}]
  %s14 = sld [smem:[#allocation0]]
  $region78: #{actor_critic_forward.1} parent=0
    _
  %s16 = ssub.s32 1, %s14
  %s17 = scalar_select 0, %s16, %s14
  %v18 = vstv %s12
  %19 = vst [vmem:[#allocation2] sm:$0x1] %v18
  $region1: #{actor_critic_forward.1} parent=0
    #allocation3 [shape = 'u8[262144]{0}', space=vmem, size = 0x40000, scoped, tag = 'input window, operand 3, single buffered']
    #allocation4 [shape = 's32[1]{0}', space=sflag, size = 0x4, scoped, tag = 'scoped memory for actor_critic_forward.1']
    #allocation5 [shape = 'u8[131072]{0}', space=vmem, size = 0x20000, scoped, tag = 'input window, operand 5, single buffered']
    #allocation6 [shape = 's32[1]{0}', space=sflag, size = 0x4, scoped, tag = 'scoped memory for actor_critic_forward.1']
    #allocation7 [shape = 'u8[131072]{0}', space=vmem, size = 0x20000, scoped, tag = 'input window, operand 7, single buffered']
    #allocation8 [shape = 'u8[262144]{0}', space=vmem, size = 0x40000, scoped, tag = 'input window, operand 9, single buffered']
    #allocation9 [shape = 's32[1]{0}', space=sflag, size = 0x4, scoped, tag = 'scoped memory for actor_critic_forward.1']
    %20 = vsyncpa [#allocation4], 0
    %21 = vsyncpa [#allocation6], 0
    %22 = vsyncpa [#allocation9], 0
    // Predicated region
    $region2: #{actor_critic_forward.1} parent=1 // pred_check
      _
    $region3: #{actor_critic_forward.1} parent=1 // pred_check_branch
      %24 = sbr.rel (0) target = $region5
    $region4: #{actor_critic_forward.1} parent=1 // pred_region
      _
    $region5: #{actor_critic_forward.1} parent=1 // pred_fallthru
      _
    // Predicated region
    $region6: #{actor_critic_forward.1} parent=1 // pred_check
      _
    $region7: #{actor_critic_forward.1} parent=1 // pred_check_branch
      %26 = sbr.rel (0) target = $region9
    $region8: #{actor_critic_forward.1} parent=1 // pred_region
      _
    $region9: #{actor_critic_forward.1} parent=1 // pred_fallthru
      _
    // Predicated region
    $region10: #{actor_critic_forward.1} parent=1 // pred_check
      _
    $region11: #{actor_critic_forward.1} parent=1 // pred_check_branch
      %28 = sbr.rel (0) target = $region13
    $region12: #{actor_critic_forward.1} parent=1 // pred_region
      _
    $region13: #{actor_critic_forward.1} parent=1 // pred_fallthru
      _
    // Predicated region
    $region14: #{actor_critic_forward.1} parent=1 // pred_check
      _
    $region15: #{actor_critic_forward.1} parent=1 // pred_check_branch
      %30 = sbr.rel (0) target = $region17
    $region16: #{actor_critic_forward.1} parent=1 // pred_region
      %s32 = ssub.s32 8192, 8192
      %33 = vsyncadd [#allocation4], %s32
      %s34 = sshll.u32 [#allocation3], 4
      %s35 = int_to_ptr.vmem [resolvable:$true] %s34
      %40 = dma.hbm_to_vmem [thread:$0]  %s3, 8192, %s35, [#allocation4], 256, 256, 16
    $region17: #{actor_critic_forward.1} parent=1 // pred_fallthru
      _
    // Predicated region
    $region18: #{actor_critic_forward.1} parent=1 // pred_check
      _
    $region19: #{actor_critic_forward.1} parent=1 // pred_check_branch
      %42 = sbr.rel (0) target = $region21
    $region20: #{actor_critic_forward.1} parent=1 // pred_region
      _
    $region21: #{actor_critic_forward.1} parent=1 // pred_fallthru
      _
    // Predicated region
    $region22: #{actor_critic_forward.1} parent=1 // pred_check
      _
    $region23: #{actor_critic_forward.1} parent=1 // pred_check_branch
      %44 = sbr.rel (0) target = $region25
    $region24: #{actor_critic_forward.1} parent=1 // pred_region
      %s46 = ssub.s32 4096, 4096
      %47 = vsyncadd [#allocation6], %s46
      %s48 = sshll.u32 [#allocation5], 4
      %s49 = int_to_ptr.vmem [resolvable:$true] %s48
      %54 = dma.hbm_to_vmem [thread:$0]  %s5, 4096, %s49, [#allocation6], 128, 128, 8
    $region25: #{actor_critic_forward.1} parent=1 // pred_fallthru
      _
    // Predicated region
    $region26: #{actor_critic_forward.1} parent=1 // pred_check
      _
    $region27: #{actor_critic_forward.1} parent=1 // pred_check_branch
      %56 = sbr.rel (0) target = $region29
    $region28: #{actor_critic_forward.1} parent=1 // pred_region
      _
    $region29: #{actor_critic_forward.1} parent=1 // pred_fallthru
      _
    // Predicated region
    $region30: #{actor_critic_forward.1} parent=1 // pred_check
      _
    $region31: #{actor_critic_forward.1} parent=1 // pred_check_branch
      %58 = sbr.rel (0) target = $region33
    $region32: #{actor_critic_forward.1} parent=1 // pred_region
      %s60 = ssub.s32 4096, 4096
      %61 = vsyncadd [#allocation6], %s60
      %s62 = sshll.u32 [#allocation7], 4
      %s63 = int_to_ptr.vmem [resolvable:$true] %s62
      %68 = dma.hbm_to_vmem [thread:$0]  %s7, 4096, %s63, [#allocation6], 256, 256, 16
    $region33: #{actor_critic_forward.1} parent=1 // pred_fallthru
      _
    // Predicated region
    $region34: #{actor_critic_forward.1} parent=1 // pred_check
      _
    $region35: #{actor_critic_forward.1} parent=1 // pred_check_branch
      %70 = sbr.rel (0) target = $region37
    $region36: #{actor_critic_forward.1} parent=1 // pred_region
      _
    $region37: #{actor_critic_forward.1} parent=1 // pred_fallthru
      _
    // Predicated region
    $region38: #{actor_critic_forward.1} parent=1 // pred_check
      _
    $region39: #{actor_critic_forward.1} parent=1 // pred_check_branch
      %72 = sbr.rel (0) target = $region41
    $region40: #{actor_critic_forward.1} parent=1 // pred_region
      %s74 = ssub.s32 8192, 8192
      %75 = vsyncadd [#allocation9], %s74
      %s76 = sshll.u32 [#allocation8], 4
      %s77 = int_to_ptr.vmem [resolvable:$true] %s76
      %82 = dma.hbm_to_vmem [thread:$0]  %s9, 8192, %s77, [#allocation9], 256, 256, 16
    $region41: #{actor_critic_forward.1} parent=1 // pred_fallthru
      _
    // Predicated region
    $region42: #{actor_critic_forward.1} parent=1 // pred_check
      _
    $region43: #{actor_critic_forward.1} parent=1 // pred_check_branch
      %84 = sbr.rel (0) target = $region45
    $region44: #{actor_critic_forward.1} parent=1 // pred_region
      _
    $region45: #{actor_critic_forward.1} parent=1 // pred_fallthru
      _
    // Predicated region
    $region46: #{actor_critic_forward.1} parent=1 // pred_check
      _
    $region47: #{actor_critic_forward.1} parent=1 // pred_check_branch
      %86 = sbr.rel (0) target = $region49
    $region48: #{actor_critic_forward.1} parent=1 // pred_region
      _
    $region49: #{actor_critic_forward.1} parent=1 // pred_fallthru
      _
    // Predicated region
    $region50: #{actor_critic_forward.1} parent=1 // pred_check
      _
    $region51: #{actor_critic_forward.1} parent=1 // pred_check_branch
      %88 = sbr.rel (0) target = $region53
    $region52: #{actor_critic_forward.1} parent=1 // pred_region
      _
    $region53: #{actor_critic_forward.1} parent=1 // pred_fallthru
      _
    // Predicated region
    $region54: #{actor_critic_forward.1} parent=1 // pred_check
      _
    $region55: #{actor_critic_forward.1} parent=1 // pred_check_branch
      %90 = sbr.rel (0) target = $region57
    $region56: #{actor_critic_forward.1} parent=1 // pred_region
      %91 = dma.done [#allocation4], 8192
    $region57: #{actor_critic_forward.1} parent=1 // pred_fallthru
      _
    // Predicated region
    $region58: #{actor_critic_forward.1} parent=1 // pred_check
      _
    $region59: #{actor_critic_forward.1} parent=1 // pred_check_branch
      %93 = sbr.rel (0) target = $region61
    $region60: #{actor_critic_forward.1} parent=1 // pred_region
      %94 = dma.done [#allocation6], 4096
    $region61: #{actor_critic_forward.1} parent=1 // pred_fallthru
      _
    // Predicated region
    $region62: #{actor_critic_forward.1} parent=1 // pred_check
      _
    $region63: #{actor_critic_forward.1} parent=1 // pred_check_branch
      %96 = sbr.rel (0) target = $region65
    $region64: #{actor_critic_forward.1} parent=1 // pred_region
      %97 = dma.done [#allocation6], 4096
    $region65: #{actor_critic_forward.1} parent=1 // pred_fallthru
      _
    // Predicated region
    $region66: #{actor_critic_forward.1} parent=1 // pred_check
      _
    $region67: #{actor_critic_forward.1} parent=1 // pred_check_branch
      %99 = sbr.rel (0) target = $region69
    $region68: #{actor_critic_forward.1} parent=1 // pred_region
      %100 = dma.done [#allocation9], 8192
    $region69: #{actor_critic_forward.1} parent=1 // pred_fallthru
      _
    %v101 = vld [vmem:[%s0] sm:$0xff]
    %v102 = vld [vmem:[%s1] sm:$0xff]
    %v103 = vld [vmem:[%s1 + $0x8] sm:$0xff]
    %v104 = vld [vmem:[%s1 + $0x10] sm:$0xff]
    %v105 = vld [vmem:[%s1 + $0x18] sm:$0xff]
    %v106 = vld [vmem:[%s1 + $0x20] sm:$0xff]
    %v107 = vld [vmem:[%s1 + $0x28] sm:$0xff]
    %v108 = vld [vmem:[%s1 + $0x30] sm:$0xff]
    %v109 = vld [vmem:[%s1 + $0x38] sm:$0xff]
    %v110 = vld [vmem:[%s1 + $0x40] sm:$0xff]
    %v111 = vld [vmem:[%s1 + $0x48] sm:$0xff]
    %v112 = vld [vmem:[%s1 + $0x50] sm:$0xff]
    %v113 = vld [vmem:[%s1 + $0x58] sm:$0xff]
    %v114 = vld [vmem:[%s1 + $0x60] sm:$0xff]
    %v115 = vld [vmem:[%s1 + $0x68] sm:$0xff]
    %v116 = vld [vmem:[%s1 + $0x70] sm:$0xff]
    %v117 = vld [vmem:[%s1 + $0x78] sm:$0xff]
    %v118 = vld [vmem:[%s1 + $0x80] sm:$0xff]
    %v119 = vld [vmem:[%s1 + $0x88] sm:$0xff]
    %v120 = vld [vmem:[%s1 + $0x90] sm:$0xff]
    %v121 = vld [vmem:[%s1 + $0x98] sm:$0xff]
    %v122 = vld [vmem:[%s1 + $0xa0] sm:$0xff]
    %v123 = vld [vmem:[%s1 + $0xa8] sm:$0xff]
    %v124 = vld [vmem:[%s1 + $0xb0] sm:$0xff]
    %v125 = vld [vmem:[%s1 + $0xb8] sm:$0xff]
    %v126 = vld [vmem:[%s1 + $0xc0] sm:$0xff]
    %v127 = vld [vmem:[%s1 + $0xc8] sm:$0xff]
    %v128 = vld [vmem:[%s1 + $0xd0] sm:$0xff]
    %v129 = vld [vmem:[%s1 + $0xd8] sm:$0xff]
    %v130 = vld [vmem:[%s1 + $0xe0] sm:$0xff]
    %v131 = vld [vmem:[%s1 + $0xe8] sm:$0xff]
    %v132 = vld [vmem:[%s1 + $0xf0] sm:$0xff]
    %v133 = vld [vmem:[%s1 + $0xf8] sm:$0xff]
    %v134 = vld [vmem:[%s2] sm:$0x3]
    %v136 = vlaneseq
    %v137 = vshrl.u32 %v136, 7
    %v138 = vsub.s32 0, %v137
    %v139 = vrot.slane %v134, %v138
    %v140 = vlaneseq
    %v141 = vshrl.u32 %v140, 7
    %v142 = vsub.s32 1, %v141
    %v143 = vrot.slane %v134, %v142
    %146 = vmatprep.subr.mxu0 %v103
    %147 = vmatpush1.msra.mxu0 %v102
    %148 = vmatprep.subr.mxu0 %v105
    %149 = vmatpush1.msra.mxu0 %v104
    %150 = vmatprep.subr.mxu0 %v107
    %151 = vmatpush1.msra.mxu0 %v106
    %152 = vmatprep.subr.mxu0 %v109
    %153 = vmatpush1.msra.mxu0 %v108
    %154 = vmatprep.subr.mxu0 %v111
    %155 = vmatpush1.msra.mxu0 %v110
    %156 = vmatprep.subr.mxu0 %v113
    %157 = vmatpush1.msra.mxu0 %v112
    %158 = vmatprep.subr.mxu0 %v115
    %159 = vmatpush1.msra.mxu0 %v114
    %160 = vmatprep.subr.mxu0 %v117
    %161 = vmatpush1.msra.mxu0 %v116
    %162 = vmatprep.subr.mxu0 %v119
    %163 = vmatpush1.msra.mxu0 %v118
    %164 = vmatprep.subr.mxu0 %v121
    %165 = vmatpush1.msra.mxu0 %v120
    %166 = vmatprep.subr.mxu0 %v123
    %167 = vmatpush1.msra.mxu0 %v122
    %168 = vmatprep.subr.mxu0 %v125
    %169 = vmatpush1.msra.mxu0 %v124
    %170 = vmatprep.subr.mxu0 %v127
    %171 = vmatpush1.msra.mxu0 %v126
    %172 = vmatprep.subr.mxu0 %v129
    %173 = vmatpush1.msra.mxu0 %v128
    %174 = vmatprep.subr.mxu0 %v131
    %175 = vmatpush1.msra.mxu0 %v130
    %176 = vmatprep.subr.mxu0 %v133
    %177 = vmatpush1.msra.mxu0 %v132
    %178 = vmatprep.subr.mxu0 0.0
    %179 = vmatpush1.msra.mxu0 0.0
    %180 = vmatprep.subr.mxu0 0.0
    %181 = vmatpush1.msra.mxu0 0.0
    %182 = vmatprep.subr.mxu0 0.0
    %183 = vmatpush1.msra.mxu0 0.0
    %184 = vmatprep.subr.mxu0 0.0
    %185 = vmatpush1.msra.mxu0 0.0
    %186 = vmatprep.subr.mxu0 0.0
    %187 = vmatpush1.msra.mxu0 0.0
    %188 = vmatprep.subr.mxu0 0.0
    %189 = vmatpush1.msra.mxu0 0.0
    %190 = vmatprep.subr.mxu0 0.0
    %191 = vmatpush1.msra.mxu0 0.0
    %192 = vmatprep.subr.mxu0 0.0
    %193 = vmatpush1.msra.mxu0 0.0
    %194 = vmatprep.subr.mxu0 0.0
    %195 = vmatpush1.msra.mxu0 0.0
    %196 = vmatprep.subr.mxu0 0.0
    %197 = vmatpush1.msra.mxu0 0.0
    %198 = vmatprep.subr.mxu0 0.0
    %199 = vmatpush1.msra.mxu0 0.0
    %200 = vmatprep.subr.mxu0 0.0
    %201 = vmatpush1.msra.mxu0 0.0
    %202 = vmatprep.subr.mxu0 0.0
    %203 = vmatpush1.msra.mxu0 0.0
    %204 = vmatprep.subr.mxu0 0.0
    %205 = vmatpush1.msra.mxu0 0.0
    %206 = vmatprep.subr.mxu0 0.0
    %207 = vmatpush1.msra.mxu0 0.0
    %208 = vmatprep.subr.mxu0 0.0
    %209 = vmatpush1.msra.mxu0 0.0
    %210 = vmatprep.mubr.f32.mxu0 0.0
    %211 = vmatmul.mubr.f32.gmra.mrb[0].mxu0 %v101
    %v212 = vpop.f32.mrb[0].mxu0
    %v213 = vadd.f32 %v139, %v212
    %v214 = vpop.f32.mrb[0].mxu0
    %v215 = vadd.f32 %v143, %v214
    %216 = vdwg.mxu0
    %v217 = vmax.f32 %v213, 0.0
    %v218 = vmax.f32 %v215, 0.0
    %v219 = vld [vmem:[#allocation3] sm:$0xff]
    %v220 = vld [vmem:[#allocation3 + $0x8] sm:$0xff]
    %v221 = vld [vmem:[#allocation3 + $0x10] sm:$0xff]
    %v222 = vld [vmem:[#allocation3 + $0x18] sm:$0xff]
    %v223 = vld [vmem:[#allocation3 + $0x20] sm:$0xff]
    %v224 = vld [vmem:[#allocation3 + $0x28] sm:$0xff]
    %v225 = vld [vmem:[#allocation3 + $0x30] sm:$0xff]
    %v226 = vld [vmem:[#allocation3 + $0x38] sm:$0xff]
    %v227 = vld [vmem:[#allocation3 + $0x40] sm:$0xff]
    %v228 = vld [vmem:[#allocation3 + $0x48] sm:$0xff]
    %v229 = vld [vmem:[#allocation3 + $0x50] sm:$0xff]
    %v230 = vld [vmem:[#allocation3 + $0x58] sm:$0xff]
    %v231 = vld [vmem:[#allocation3 + $0x60] sm:$0xff]
    %v232 = vld [vmem:[#allocation3 + $0x68] sm:$0xff]
    %v233 = vld [vmem:[#allocation3 + $0x70] sm:$0xff]
    %v234 = vld [vmem:[#allocation3 + $0x78] sm:$0xff]
    %v235 = vld [vmem:[#allocation3 + $0x80] sm:$0xff]
    %v236 = vld [vmem:[#allocation3 + $0x88] sm:$0xff]
    %v237 = vld [vmem:[#allocation3 + $0x90] sm:$0xff]
    %v238 = vld [vmem:[#allocation3 + $0x98] sm:$0xff]
    %v239 = vld [vmem:[#allocation3 + $0xa0] sm:$0xff]
    %v240 = vld [vmem:[#allocation3 + $0xa8] sm:$0xff]
    %v241 = vld [vmem:[#allocation3 + $0xb0] sm:$0xff]
    %v242 = vld [vmem:[#allocation3 + $0xb8] sm:$0xff]
    %v243 = vld [vmem:[#allocation3 + $0xc0] sm:$0xff]
    %v244 = vld [vmem:[#allocation3 + $0xc8] sm:$0xff]
    %v245 = vld [vmem:[#allocation3 + $0xd0] sm:$0xff]
    %v246 = vld [vmem:[#allocation3 + $0xd8] sm:$0xff]
    %v247 = vld [vmem:[#allocation3 + $0xe0] sm:$0xff]
    %v248 = vld [vmem:[#allocation3 + $0xe8] sm:$0xff]
    %v249 = vld [vmem:[#allocation3 + $0xf0] sm:$0xff]
    %v250 = vld [vmem:[#allocation3 + $0xf8] sm:$0xff]
    %v251 = vld [vmem:[#allocation3 + $0x100] sm:$0xff]
    %v252 = vld [vmem:[#allocation3 + $0x108] sm:$0xff]
    %v253 = vld [vmem:[#allocation3 + $0x110] sm:$0xff]
    %v254 = vld [vmem:[#allocation3 + $0x118] sm:$0xff]
    %v255 = vld [vmem:[#allocation3 + $0x120] sm:$0xff]
    %v256 = vld [vmem:[#allocation3 + $0x128] sm:$0xff]
    %v257 = vld [vmem:[#allocation3 + $0x130] sm:$0xff]
    %v258 = vld [vmem:[#allocation3 + $0x138] sm:$0xff]
    %v259 = vld [vmem:[#allocation3 + $0x140] sm:$0xff]
    %v260 = vld [vmem:[#allocation3 + $0x148] sm:$0xff]
    %v261 = vld [vmem:[#allocation3 + $0x150] sm:$0xff]
    %v262 = vld [vmem:[#allocation3 + $0x158] sm:$0xff]
    %v263 = vld [vmem:[#allocation3 + $0x160] sm:$0xff]
    %v264 = vld [vmem:[#allocation3 + $0x168] sm:$0xff]
    %v265 = vld [vmem:[#allocation3 + $0x170] sm:$0xff]
    %v266 = vld [vmem:[#allocation3 + $0x178] sm:$0xff]
    %v267 = vld [vmem:[#allocation3 + $0x180] sm:$0xff]
    %v268 = vld [vmem:[#allocation3 + $0x188] sm:$0xff]
    %v269 = vld [vmem:[#allocation3 + $0x190] sm:$0xff]
    %v270 = vld [vmem:[#allocation3 + $0x198] sm:$0xff]
    %v271 = vld [vmem:[#allocation3 + $0x1a0] sm:$0xff]
    %v272 = vld [vmem:[#allocation3 + $0x1a8] sm:$0xff]
    %v273 = vld [vmem:[#allocation3 + $0x1b0] sm:$0xff]
    %v274 = vld [vmem:[#allocation3 + $0x1b8] sm:$0xff]
    %v275 = vld [vmem:[#allocation3 + $0x1c0] sm:$0xff]
    %v276 = vld [vmem:[#allocation3 + $0x1c8] sm:$0xff]
    %v277 = vld [vmem:[#allocation3 + $0x1d0] sm:$0xff]
    %v278 = vld [vmem:[#allocation3 + $0x1d8] sm:$0xff]
    %v279 = vld [vmem:[#allocation3 + $0x1e0] sm:$0xff]
    %v280 = vld [vmem:[#allocation3 + $0x1e8] sm:$0xff]
    %v281 = vld [vmem:[#allocation3 + $0x1f0] sm:$0xff]
    %v282 = vld [vmem:[#allocation3 + $0x1f8] sm:$0xff]
    %v283 = vld [vmem:[%s4] sm:$0x3]
    %v285 = vlaneseq
    %v286 = vshrl.u32 %v285, 7
    %v287 = vsub.s32 0, %v286
    %v288 = vrot.slane %v283, %v287
    %v289 = vlaneseq
    %v290 = vshrl.u32 %v289, 7
    %v291 = vsub.s32 1, %v290
    %v292 = vrot.slane %v283, %v291
    %295 = vmatprep.subr.mxu0 %v220
    %296 = vmatpush1.msra.mxu0 %v219
    %297 = vmatprep.subr.mxu0 %v222
    %298 = vmatpush1.msra.mxu0 %v221
    %299 = vmatprep.subr.mxu0 %v224
    %300 = vmatpush1.msra.mxu0 %v223
    %301 = vmatprep.subr.mxu0 %v226
    %302 = vmatpush1.msra.mxu0 %v225
    %303 = vmatprep.subr.mxu0 %v228
    %304 = vmatpush1.msra.mxu0 %v227
    %305 = vmatprep.subr.mxu0 %v230
    %306 = vmatpush1.msra.mxu0 %v229
    %307 = vmatprep.subr.mxu0 %v232
    %308 = vmatpush1.msra.mxu0 %v231
    %309 = vmatprep.subr.mxu0 %v234
    %310 = vmatpush1.msra.mxu0 %v233
    %311 = vmatprep.subr.mxu0 %v236
    %312 = vmatpush1.msra.mxu0 %v235
    %313 = vmatprep.subr.mxu0 %v238
    %314 = vmatpush1.msra.mxu0 %v237
    %315 = vmatprep.subr.mxu0 %v240
    %316 = vmatpush1.msra.mxu0 %v239
    %317 = vmatprep.subr.mxu0 %v242
    %318 = vmatpush1.msra.mxu0 %v241
    %319 = vmatprep.subr.mxu0 %v244
    %320 = vmatpush1.msra.mxu0 %v243
    %321 = vmatprep.subr.mxu0 %v246
    %322 = vmatpush1.msra.mxu0 %v245
    %323 = vmatprep.subr.mxu0 %v248
    %324 = vmatpush1.msra.mxu0 %v247
    %325 = vmatprep.subr.mxu0 %v250
    %326 = vmatpush1.msra.mxu0 %v249
    %327 = vmatprep.subr.mxu0 %v252
    %328 = vmatpush1.msra.mxu0 %v251
    %329 = vmatprep.subr.mxu0 %v254
    %330 = vmatpush1.msra.mxu0 %v253
    %331 = vmatprep.subr.mxu0 %v256
    %332 = vmatpush1.msra.mxu0 %v255
    %333 = vmatprep.subr.mxu0 %v258
    %334 = vmatpush1.msra.mxu0 %v257
    %335 = vmatprep.subr.mxu0 %v260
    %336 = vmatpush1.msra.mxu0 %v259
    %337 = vmatprep.subr.mxu0 %v262
    %338 = vmatpush1.msra.mxu0 %v261
    %339 = vmatprep.subr.mxu0 %v264
    %340 = vmatpush1.msra.mxu0 %v263
    %341 = vmatprep.subr.mxu0 %v266
    %342 = vmatpush1.msra.mxu0 %v265
    %343 = vmatprep.subr.mxu0 %v268
    %344 = vmatpush1.msra.mxu0 %v267
    %345 = vmatprep.subr.mxu0 %v270
    %346 = vmatpush1.msra.mxu0 %v269
    %347 = vmatprep.subr.mxu0 %v272
    %348 = vmatpush1.msra.mxu0 %v271
    %349 = vmatprep.subr.mxu0 %v274
    %350 = vmatpush1.msra.mxu0 %v273
    %351 = vmatprep.subr.mxu0 %v276
    %352 = vmatpush1.msra.mxu0 %v275
    %353 = vmatprep.subr.mxu0 %v278
    %354 = vmatpush1.msra.mxu0 %v277
    %355 = vmatprep.subr.mxu0 %v280
    %356 = vmatpush1.msra.mxu0 %v279
    %357 = vmatprep.subr.mxu0 %v282
    %358 = vmatpush1.msra.mxu0 %v281
    %359 = vmatprep.mubr.f32.mxu0 %v218
    %360 = vmatmul.mubr.f32.gmra.mrb[0].mxu0 %v217
    %v361 = vpop.f32.mrb[0].mxu0
    %v362 = vadd.f32 %v288, %v361
    %v363 = vpop.f32.mrb[0].mxu0
    %v364 = vadd.f32 %v292, %v363
    %365 = vdwg.mxu0
    %v366 = vmax.f32 %v362, 0.0
    %v367 = vmax.f32 %v364, 0.0
    %v368 = vld [vmem:[#allocation5] sm:$0xff]
    %v369 = vld [vmem:[#allocation5 + $0x8] sm:$0xff]
    %v370 = vld [vmem:[#allocation5 + $0x10] sm:$0xff]
    %v371 = vld [vmem:[#allocation5 + $0x18] sm:$0xff]
    %v372 = vld [vmem:[#allocation5 + $0x20] sm:$0xff]
    %v373 = vld [vmem:[#allocation5 + $0x28] sm:$0xff]
    %v374 = vld [vmem:[#allocation5 + $0x30] sm:$0xff]
    %v375 = vld [vmem:[#allocation5 + $0x38] sm:$0xff]
    %v376 = vld [vmem:[#allocation5 + $0x40] sm:$0xff]
    %v377 = vld [vmem:[#allocation5 + $0x48] sm:$0xff]
    %v378 = vld [vmem:[#allocation5 + $0x50] sm:$0xff]
    %v379 = vld [vmem:[#allocation5 + $0x58] sm:$0xff]
    %v380 = vld [vmem:[#allocation5 + $0x60] sm:$0xff]
    %v381 = vld [vmem:[#allocation5 + $0x68] sm:$0xff]
    %v382 = vld [vmem:[#allocation5 + $0x70] sm:$0xff]
    %v383 = vld [vmem:[#allocation5 + $0x78] sm:$0xff]
    %v384 = vld [vmem:[#allocation5 + $0x80] sm:$0xff]
    %v385 = vld [vmem:[#allocation5 + $0x88] sm:$0xff]
    %v386 = vld [vmem:[#allocation5 + $0x90] sm:$0xff]
    %v387 = vld [vmem:[#allocation5 + $0x98] sm:$0xff]
    %v388 = vld [vmem:[#allocation5 + $0xa0] sm:$0xff]
    %v389 = vld [vmem:[#allocation5 + $0xa8] sm:$0xff]
    %v390 = vld [vmem:[#allocation5 + $0xb0] sm:$0xff]
    %v391 = vld [vmem:[#allocation5 + $0xb8] sm:$0xff]
    %v392 = vld [vmem:[#allocation5 + $0xc0] sm:$0xff]
    %v393 = vld [vmem:[#allocation5 + $0xc8] sm:$0xff]
    %v394 = vld [vmem:[#allocation5 + $0xd0] sm:$0xff]
    %v395 = vld [vmem:[#allocation5 + $0xd8] sm:$0xff]
    %v396 = vld [vmem:[#allocation5 + $0xe0] sm:$0xff]
    %v397 = vld [vmem:[#allocation5 + $0xe8] sm:$0xff]
    %v398 = vld [vmem:[#allocation5 + $0xf0] sm:$0xff]
    %v399 = vld [vmem:[#allocation5 + $0xf8] sm:$0xff]
    %v400 = vld [vmem:[%s6] sm:$0x1]
    %v402 = vlaneseq
    %v403 = vshrl.u32 %v402, 7
    %v404 = vsub.s32 0, %v403
    %v405 = vrot.slane %v400, %v404
    %407 = vmatprep.subr.mxu0 0.0
    %408 = vmatpush1.msra.mxu0 %v368
    %409 = vmatprep.subr.mxu0 0.0
    %410 = vmatpush1.msra.mxu0 %v369
    %411 = vmatprep.subr.mxu0 0.0
    %412 = vmatpush1.msra.mxu0 %v370
    %413 = vmatprep.subr.mxu0 0.0
    %414 = vmatpush1.msra.mxu0 %v371
    %415 = vmatprep.subr.mxu0 0.0
    %416 = vmatpush1.msra.mxu0 %v372
    %417 = vmatprep.subr.mxu0 0.0
    %418 = vmatpush1.msra.mxu0 %v373
    %419 = vmatprep.subr.mxu0 0.0
    %420 = vmatpush1.msra.mxu0 %v374
    %421 = vmatprep.subr.mxu0 0.0
    %422 = vmatpush1.msra.mxu0 %v375
    %423 = vmatprep.subr.mxu0 0.0
    %424 = vmatpush1.msra.mxu0 %v376
    %425 = vmatprep.subr.mxu0 0.0
    %426 = vmatpush1.msra.mxu0 %v377
    %427 = vmatprep.subr.mxu0 0.0
    %428 = vmatpush1.msra.mxu0 %v378
    %429 = vmatprep.subr.mxu0 0.0
    %430 = vmatpush1.msra.mxu0 %v379
    %431 = vmatprep.subr.mxu0 0.0
    %432 = vmatpush1.msra.mxu0 %v380
    %433 = vmatprep.subr.mxu0 0.0
    %434 = vmatpush1.msra.mxu0 %v381
    %435 = vmatprep.subr.mxu0 0.0
    %436 = vmatpush1.msra.mxu0 %v382
    %437 = vmatprep.subr.mxu0 0.0
    %438 = vmatpush1.msra.mxu0 %v383
    %439 = vmatprep.subr.mxu0 0.0
    %440 = vmatpush1.msra.mxu0 %v384
    %441 = vmatprep.subr.mxu0 0.0
    %442 = vmatpush1.msra.mxu0 %v385
    %443 = vmatprep.subr.mxu0 0.0
    %444 = vmatpush1.msra.mxu0 %v386
    %445 = vmatprep.subr.mxu0 0.0
    %446 = vmatpush1.msra.mxu0 %v387
    %447 = vmatprep.subr.mxu0 0.0
    %448 = vmatpush1.msra.mxu0 %v388
    %449 = vmatprep.subr.mxu0 0.0
    %450 = vmatpush1.msra.mxu0 %v389
    %451 = vmatprep.subr.mxu0 0.0
    %452 = vmatpush1.msra.mxu0 %v390
    %453 = vmatprep.subr.mxu0 0.0
    %454 = vmatpush1.msra.mxu0 %v391
    %455 = vmatprep.subr.mxu0 0.0
    %456 = vmatpush1.msra.mxu0 %v392
    %457 = vmatprep.subr.mxu0 0.0
    %458 = vmatpush1.msra.mxu0 %v393
    %459 = vmatprep.subr.mxu0 0.0
    %460 = vmatpush1.msra.mxu0 %v394
    %461 = vmatprep.subr.mxu0 0.0
    %462 = vmatpush1.msra.mxu0 %v395
    %463 = vmatprep.subr.mxu0 0.0
    %464 = vmatpush1.msra.mxu0 %v396
    %465 = vmatprep.subr.mxu0 0.0
    %466 = vmatpush1.msra.mxu0 %v397
    %467 = vmatprep.subr.mxu0 0.0
    %468 = vmatpush1.msra.mxu0 %v398
    %469 = vmatprep.subr.mxu0 0.0
    %470 = vmatpush1.msra.mxu0 %v399
    %471 = vmatprep.mubr.f32.mxu0 %v367
    %472 = vmatmul.mubr.f32.gmra.mrb[0].mxu0 %v366
    %v473 = vpop.f32.mrb[0].mxu0
    %v474 = vadd.f32 %v405, %v473
    %v475 = vpop.f32.mrb[0].mxu0
    %476 = vdwg.mxu0
    %v477 = vtanh.pop %v474
    %v478 = vmax.f32 %v474, -20.0
    %v479 = vmin.f32 %v478, 2.0
    %v480 = vmul.f32 %v479, 1.442695
    %v481 = vpow.pop %v480
    %483 = vrot.lane.b32.xlu0 %v101, 116
    %v484 = vpop.permute.xlu0 %483
    %v486 = vmul.f32 %v481, %v484
    %488 = vrot.lane.b32.xlu0 %v486, 124
    %v489 = vpop.permute.xlu0 %488
    %v491 = vadd.f32 %v477, %v489
    %493 = vrot.lane.b32.xlu0 %v491, 16
    %v494 = vpop.permute.xlu0 %493
    %vm496 = vcmask 130048
    %v497 = vsel %vm496, %v101, %v494
    %vm498 = vcmask 162816
    %v499 = vsel %vm498, %v497, %v101
    %v500 = vld [vmem:[#allocation7] sm:$0xff]
    %v501 = vld [vmem:[#allocation7 + $0x8] sm:$0xff]
    %v502 = vld [vmem:[#allocation7 + $0x10] sm:$0xff]
    %v503 = vld [vmem:[#allocation7 + $0x18] sm:$0xff]
    %v504 = vld [vmem:[#allocation7 + $0x20] sm:$0xff]
    %v505 = vld [vmem:[#allocation7 + $0x28] sm:$0xff]
    %v506 = vld [vmem:[#allocation7 + $0x30] sm:$0xff]
    %v507 = vld [vmem:[#allocation7 + $0x38] sm:$0xff]
    %v508 = vld [vmem:[#allocation7 + $0x40] sm:$0xff]
    %v509 = vld [vmem:[#allocation7 + $0x48] sm:$0xff]
    %v510 = vld [vmem:[#allocation7 + $0x50] sm:$0xff]
    %v511 = vld [vmem:[#allocation7 + $0x58] sm:$0xff]
    %v512 = vld [vmem:[#allocation7 + $0x60] sm:$0xff]
    %v513 = vld [vmem:[#allocation7 + $0x68] sm:$0xff]
    %v514 = vld [vmem:[#allocation7 + $0x70] sm:$0xff]
    %v515 = vld [vmem:[#allocation7 + $0x78] sm:$0xff]
    %v516 = vld [vmem:[#allocation7 + $0x80] sm:$0xff]
    %v517 = vld [vmem:[#allocation7 + $0x88] sm:$0xff]
    %v518 = vld [vmem:[#allocation7 + $0x90] sm:$0xff]
    %v519 = vld [vmem:[#allocation7 + $0x98] sm:$0xff]
    %v520 = vld [vmem:[#allocation7 + $0xa0] sm:$0xff]
    %v521 = vld [vmem:[#allocation7 + $0xa8] sm:$0xff]
    %v522 = vld [vmem:[#allocation7 + $0xb0] sm:$0xff]
    %v523 = vld [vmem:[#allocation7 + $0xb8] sm:$0xff]
    %v524 = vld [vmem:[#allocation7 + $0xc0] sm:$0xff]
    %v525 = vld [vmem:[#allocation7 + $0xc8] sm:$0xff]
    %v526 = vld [vmem:[#allocation7 + $0xd0] sm:$0xff]
    %v527 = vld [vmem:[#allocation7 + $0xd8] sm:$0xff]
    %v528 = vld [vmem:[#allocation7 + $0xe0] sm:$0xff]
    %v529 = vld [vmem:[#allocation7 + $0xe8] sm:$0xff]
    %v530 = vld [vmem:[#allocation7 + $0xf0] sm:$0xff]
    %v531 = vld [vmem:[#allocation7 + $0xf8] sm:$0xff]
    %v532 = vld [vmem:[%s8] sm:$0x3]
    %v534 = vlaneseq
    %v535 = vshrl.u32 %v534, 7
    %v536 = vsub.s32 0, %v535
    %v537 = vrot.slane %v532, %v536
    %v538 = vlaneseq
    %v539 = vshrl.u32 %v538, 7
    %v540 = vsub.s32 1, %v539
    %v541 = vrot.slane %v532, %v540
    %544 = vmatprep.subr.mxu0 %v501
    %545 = vmatpush1.msra.mxu0 %v500
    %546 = vmatprep.subr.mxu0 %v503
    %547 = vmatpush1.msra.mxu0 %v502
    %548 = vmatprep.subr.mxu0 %v505
    %549 = vmatpush1.msra.mxu0 %v504
    %550 = vmatprep.subr.mxu0 %v507
    %551 = vmatpush1.msra.mxu0 %v506
    %552 = vmatprep.subr.mxu0 %v509
    %553 = vmatpush1.msra.mxu0 %v508
    %554 = vmatprep.subr.mxu0 %v511
    %555 = vmatpush1.msra.mxu0 %v510
    %556 = vmatprep.subr.mxu0 %v513
    %557 = vmatpush1.msra.mxu0 %v512
    %558 = vmatprep.subr.mxu0 %v515
    %559 = vmatpush1.msra.mxu0 %v514
    %560 = vmatprep.subr.mxu0 %v517
    %561 = vmatpush1.msra.mxu0 %v516
    %562 = vmatprep.subr.mxu0 %v519
    %563 = vmatpush1.msra.mxu0 %v518
    %564 = vmatprep.subr.mxu0 %v521
    %565 = vmatpush1.msra.mxu0 %v520
    %566 = vmatprep.subr.mxu0 %v523
    %567 = vmatpush1.msra.mxu0 %v522
    %568 = vmatprep.subr.mxu0 %v525
    %569 = vmatpush1.msra.mxu0 %v524
    %570 = vmatprep.subr.mxu0 %v527
    %571 = vmatpush1.msra.mxu0 %v526
    %572 = vmatprep.subr.mxu0 %v529
    %573 = vmatpush1.msra.mxu0 %v528
    %574 = vmatprep.subr.mxu0 %v531
    %575 = vmatpush1.msra.mxu0 %v530
    %576 = vmatprep.subr.mxu0 0.0
    %577 = vmatpush1.msra.mxu0 0.0
    %578 = vmatprep.subr.mxu0 0.0
    %579 = vmatpush1.msra.mxu0 0.0
    %580 = vmatprep.subr.mxu0 0.0
    %581 = vmatpush1.msra.mxu0 0.0
    %582 = vmatprep.subr.mxu0 0.0
    %583 = vmatpush1.msra.mxu0 0.0
    %584 = vmatprep.subr.mxu0 0.0
    %585 = vmatpush1.msra.mxu0 0.0
    %586 = vmatprep.subr.mxu0 0.0
    %587 = vmatpush1.msra.mxu0 0.0
    %588 = vmatprep.subr.mxu0 0.0
    %589 = vmatpush1.msra.mxu0 0.0
    %590 = vmatprep.subr.mxu0 0.0
    %591 = vmatpush1.msra.mxu0 0.0
    %592 = vmatprep.subr.mxu0 0.0
    %593 = vmatpush1.msra.mxu0 0.0
    %594 = vmatprep.subr.mxu0 0.0
    %595 = vmatpush1.msra.mxu0 0.0
    %596 = vmatprep.subr.mxu0 0.0
    %597 = vmatpush1.msra.mxu0 0.0
    %598 = vmatprep.subr.mxu0 0.0
    %599 = vmatpush1.msra.mxu0 0.0
    %600 = vmatprep.subr.mxu0 0.0
    %601 = vmatpush1.msra.mxu0 0.0
    %602 = vmatprep.subr.mxu0 0.0
    %603 = vmatpush1.msra.mxu0 0.0
    %604 = vmatprep.subr.mxu0 0.0
    %605 = vmatpush1.msra.mxu0 0.0
    %606 = vmatprep.subr.mxu0 0.0
    %607 = vmatpush1.msra.mxu0 0.0
    %608 = vmatprep.mubr.f32.mxu0 0.0
    %609 = vmatmul.mubr.f32.gmra.mrb[0].mxu0 %v499
    %v610 = vpop.f32.mrb[0].mxu0
    %v611 = vadd.f32 %v537, %v610
    %v612 = vpop.f32.mrb[0].mxu0
    %v613 = vadd.f32 %v541, %v612
    %614 = vdwg.mxu0
    %v615 = vmax.f32 %v611, 0.0
    %v616 = vmax.f32 %v613, 0.0
    %v617 = vld [vmem:[#allocation8] sm:$0xff]
    %v618 = vld [vmem:[#allocation8 + $0x8] sm:$0xff]
    %v619 = vld [vmem:[#allocation8 + $0x10] sm:$0xff]
    %v620 = vld [vmem:[#allocation8 + $0x18] sm:$0xff]
    %v621 = vld [vmem:[#allocation8 + $0x20] sm:$0xff]
    %v622 = vld [vmem:[#allocation8 + $0x28] sm:$0xff]
    %v623 = vld [vmem:[#allocation8 + $0x30] sm:$0xff]
    %v624 = vld [vmem:[#allocation8 + $0x38] sm:$0xff]
    %v625 = vld [vmem:[#allocation8 + $0x40] sm:$0xff]
    %v626 = vld [vmem:[#allocation8 + $0x48] sm:$0xff]
    %v627 = vld [vmem:[#allocation8 + $0x50] sm:$0xff]
    %v628 = vld [vmem:[#allocation8 + $0x58] sm:$0xff]
    %v629 = vld [vmem:[#allocation8 + $0x60] sm:$0xff]
    %v630 = vld [vmem:[#allocation8 + $0x68] sm:$0xff]
    %v631 = vld [vmem:[#allocation8 + $0x70] sm:$0xff]
    %v632 = vld [vmem:[#allocation8 + $0x78] sm:$0xff]
    %v633 = vld [vmem:[#allocation8 + $0x80] sm:$0xff]
    %v634 = vld [vmem:[#allocation8 + $0x88] sm:$0xff]
    %v635 = vld [vmem:[#allocation8 + $0x90] sm:$0xff]
    %v636 = vld [vmem:[#allocation8 + $0x98] sm:$0xff]
    %v637 = vld [vmem:[#allocation8 + $0xa0] sm:$0xff]
    %v638 = vld [vmem:[#allocation8 + $0xa8] sm:$0xff]
    %v639 = vld [vmem:[#allocation8 + $0xb0] sm:$0xff]
    %v640 = vld [vmem:[#allocation8 + $0xb8] sm:$0xff]
    %v641 = vld [vmem:[#allocation8 + $0xc0] sm:$0xff]
    %v642 = vld [vmem:[#allocation8 + $0xc8] sm:$0xff]
    %v643 = vld [vmem:[#allocation8 + $0xd0] sm:$0xff]
    %v644 = vld [vmem:[#allocation8 + $0xd8] sm:$0xff]
    %v645 = vld [vmem:[#allocation8 + $0xe0] sm:$0xff]
    %v646 = vld [vmem:[#allocation8 + $0xe8] sm:$0xff]
    %v647 = vld [vmem:[#allocation8 + $0xf0] sm:$0xff]
    %v648 = vld [vmem:[#allocation8 + $0xf8] sm:$0xff]
    %v649 = vld [vmem:[#allocation8 + $0x100] sm:$0xff]
    %v650 = vld [vmem:[#allocation8 + $0x108] sm:$0xff]
    %v651 = vld [vmem:[#allocation8 + $0x110] sm:$0xff]
    %v652 = vld [vmem:[#allocation8 + $0x118] sm:$0xff]
    %v653 = vld [vmem:[#allocation8 + $0x120] sm:$0xff]
    %v654 = vld [vmem:[#allocation8 + $0x128] sm:$0xff]
    %v655 = vld [vmem:[#allocation8 + $0x130] sm:$0xff]
    %v656 = vld [vmem:[#allocation8 + $0x138] sm:$0xff]
    %v657 = vld [vmem:[#allocation8 + $0x140] sm:$0xff]
    %v658 = vld [vmem:[#allocation8 + $0x148] sm:$0xff]
    %v659 = vld [vmem:[#allocation8 + $0x150] sm:$0xff]
    %v660 = vld [vmem:[#allocation8 + $0x158] sm:$0xff]
    %v661 = vld [vmem:[#allocation8 + $0x160] sm:$0xff]
    %v662 = vld [vmem:[#allocation8 + $0x168] sm:$0xff]
    %v663 = vld [vmem:[#allocation8 + $0x170] sm:$0xff]
    %v664 = vld [vmem:[#allocation8 + $0x178] sm:$0xff]
    %v665 = vld [vmem:[#allocation8 + $0x180] sm:$0xff]
    %v666 = vld [vmem:[#allocation8 + $0x188] sm:$0xff]
    %v667 = vld [vmem:[#allocation8 + $0x190] sm:$0xff]
    %v668 = vld [vmem:[#allocation8 + $0x198] sm:$0xff]
    %v669 = vld [vmem:[#allocation8 + $0x1a0] sm:$0xff]
    %v670 = vld [vmem:[#allocation8 + $0x1a8] sm:$0xff]
    %v671 = vld [vmem:[#allocation8 + $0x1b0] sm:$0xff]
    %v672 = vld [vmem:[#allocation8 + $0x1b8] sm:$0xff]
    %v673 = vld [vmem:[#allocation8 + $0x1c0] sm:$0xff]
    %v674 = vld [vmem:[#allocation8 + $0x1c8] sm:$0xff]
    %v675 = vld [vmem:[#allocation8 + $0x1d0] sm:$0xff]
    %v676 = vld [vmem:[#allocation8 + $0x1d8] sm:$0xff]
    %v677 = vld [vmem:[#allocation8 + $0x1e0] sm:$0xff]
    %v678 = vld [vmem:[#allocation8 + $0x1e8] sm:$0xff]
    %v679 = vld [vmem:[#allocation8 + $0x1f0] sm:$0xff]
    %v680 = vld [vmem:[#allocation8 + $0x1f8] sm:$0xff]
    %v681 = vld [vmem:[%s10] sm:$0x3]
    %v683 = vlaneseq
    %v684 = vshrl.u32 %v683, 7
    %v685 = vsub.s32 0, %v684
    %v686 = vrot.slane %v681, %v685
    %v687 = vlaneseq
    %v688 = vshrl.u32 %v687, 7
    %v689 = vsub.s32 1, %v688
    %v690 = vrot.slane %v681, %v689
    %693 = vmatprep.subr.mxu0 %v618
    %694 = vmatpush1.msra.mxu0 %v617
    %695 = vmatprep.subr.mxu0 %v620
    %696 = vmatpush1.msra.mxu0 %v619
    %697 = vmatprep.subr.mxu0 %v622
    %698 = vmatpush1.msra.mxu0 %v621
    %699 = vmatprep.subr.mxu0 %v624
    %700 = vmatpush1.msra.mxu0 %v623
    %701 = vmatprep.subr.mxu0 %v626
    %702 = vmatpush1.msra.mxu0 %v625
    %703 = vmatprep.subr.mxu0 %v628
    %704 = vmatpush1.msra.mxu0 %v627
    %705 = vmatprep.subr.mxu0 %v630
    %706 = vmatpush1.msra.mxu0 %v629
    %707 = vmatprep.subr.mxu0 %v632
    %708 = vmatpush1.msra.mxu0 %v631
    %709 = vmatprep.subr.mxu0 %v634
    %710 = vmatpush1.msra.mxu0 %v633
    %711 = vmatprep.subr.mxu0 %v636
    %712 = vmatpush1.msra.mxu0 %v635
    %713 = vmatprep.subr.mxu0 %v638
    %714 = vmatpush1.msra.mxu0 %v637
    %715 = vmatprep.subr.mxu0 %v640
    %716 = vmatpush1.msra.mxu0 %v639
    %717 = vmatprep.subr.mxu0 %v642
    %718 = vmatpush1.msra.mxu0 %v641
    %719 = vmatprep.subr.mxu0 %v644
    %720 = vmatpush1.msra.mxu0 %v643
    %721 = vmatprep.subr.mxu0 %v646
    %722 = vmatpush1.msra.mxu0 %v645
    %723 = vmatprep.subr.mxu0 %v648
    %724 = vmatpush1.msra.mxu0 %v647
    %725 = vmatprep.subr.mxu0 %v650
    %726 = vmatpush1.msra.mxu0 %v649
    %727 = vmatprep.subr.mxu0 %v652
    %728 = vmatpush1.msra.mxu0 %v651
    %729 = vmatprep.subr.mxu0 %v654
    %730 = vmatpush1.msra.mxu0 %v653
    %731 = vmatprep.subr.mxu0 %v656
    %732 = vmatpush1.msra.mxu0 %v655
    %733 = vmatprep.subr.mxu0 %v658
    %734 = vmatpush1.msra.mxu0 %v657
    %735 = vmatprep.subr.mxu0 %v660
    %736 = vmatpush1.msra.mxu0 %v659
    %737 = vmatprep.subr.mxu0 %v662
    %738 = vmatpush1.msra.mxu0 %v661
    %739 = vmatprep.subr.mxu0 %v664
    %740 = vmatpush1.msra.mxu0 %v663
    %741 = vmatprep.subr.mxu0 %v666
    %742 = vmatpush1.msra.mxu0 %v665
    %743 = vmatprep.subr.mxu0 %v668
    %744 = vmatpush1.msra.mxu0 %v667
    %745 = vmatprep.subr.mxu0 %v670
    %746 = vmatpush1.msra.mxu0 %v669
    %747 = vmatprep.subr.mxu0 %v672
    %748 = vmatpush1.msra.mxu0 %v671
    %749 = vmatprep.subr.mxu0 %v674
    %750 = vmatpush1.msra.mxu0 %v673
    %751 = vmatprep.subr.mxu0 %v676
    %752 = vmatpush1.msra.mxu0 %v675
    %753 = vmatprep.subr.mxu0 %v678
    %754 = vmatpush1.msra.mxu0 %v677
    %755 = vmatprep.subr.mxu0 %v680
    %756 = vmatpush1.msra.mxu0 %v679
    %757 = vmatprep.mubr.f32.mxu0 %v616
    %758 = vmatmul.mubr.f32.gmra.mrb[0].mxu0 %v615
    %v759 = vpop.f32.mrb[0].mxu0
    %v760 = vadd.f32 %v686, %v759
    %v761 = vpop.f32.mrb[0].mxu0
    %v762 = vadd.f32 %v690, %v761
    %763 = vdwg.mxu0
    %v764 = vmax.f32 %v760, 0.0
    %v765 = vmax.f32 %v762, 0.0
    %v766 = vld [vmem:[%s11] sm:$0xff]
    %v767 = vld [vmem:[%s11 + $0x8] sm:$0xff]
    %v768 = vld [vmem:[%s11 + $0x10] sm:$0xff]
    %v769 = vld [vmem:[%s11 + $0x18] sm:$0xff]
    %v770 = vld [vmem:[%s11 + $0x20] sm:$0xff]
    %v771 = vld [vmem:[%s11 + $0x28] sm:$0xff]
    %v772 = vld [vmem:[%s11 + $0x30] sm:$0xff]
    %v773 = vld [vmem:[%s11 + $0x38] sm:$0xff]
    %v774 = vld [vmem:[%s11 + $0x40] sm:$0xff]
    %v775 = vld [vmem:[%s11 + $0x48] sm:$0xff]
    %v776 = vld [vmem:[%s11 + $0x50] sm:$0xff]
    %v777 = vld [vmem:[%s11 + $0x58] sm:$0xff]
    %v778 = vld [vmem:[%s11 + $0x60] sm:$0xff]
    %v779 = vld [vmem:[%s11 + $0x68] sm:$0xff]
    %v780 = vld [vmem:[%s11 + $0x70] sm:$0xff]
    %v781 = vld [vmem:[%s11 + $0x78] sm:$0xff]
    %v782 = vld [vmem:[%s11 + $0x80] sm:$0xff]
    %v783 = vld [vmem:[%s11 + $0x88] sm:$0xff]
    %v784 = vld [vmem:[%s11 + $0x90] sm:$0xff]
    %v785 = vld [vmem:[%s11 + $0x98] sm:$0xff]
    %v786 = vld [vmem:[%s11 + $0xa0] sm:$0xff]
    %v787 = vld [vmem:[%s11 + $0xa8] sm:$0xff]
    %v788 = vld [vmem:[%s11 + $0xb0] sm:$0xff]
    %v789 = vld [vmem:[%s11 + $0xb8] sm:$0xff]
    %v790 = vld [vmem:[%s11 + $0xc0] sm:$0xff]
    %v791 = vld [vmem:[%s11 + $0xc8] sm:$0xff]
    %v792 = vld [vmem:[%s11 + $0xd0] sm:$0xff]
    %v793 = vld [vmem:[%s11 + $0xd8] sm:$0xff]
    %v794 = vld [vmem:[%s11 + $0xe0] sm:$0xff]
    %v795 = vld [vmem:[%s11 + $0xe8] sm:$0xff]
    %v796 = vld [vmem:[%s11 + $0xf0] sm:$0xff]
    %v797 = vld [vmem:[%s11 + $0xf8] sm:$0xff]
    %v798 = vld [vmem:[#allocation2] sm:$0x1]
    %v800 = vlaneseq
    %v801 = vshrl.u32 %v800, 7
    %v802 = vsub.s32 0, %v801
    %v803 = vrot.slane %v798, %v802
    %805 = vmatprep.subr.mxu0 0.0
    %806 = vmatpush1.msra.mxu0 %v766
    %807 = vmatprep.subr.mxu0 0.0
    %808 = vmatpush1.msra.mxu0 %v767
    %809 = vmatprep.subr.mxu0 0.0
    %810 = vmatpush1.msra.mxu0 %v768
    %811 = vmatprep.subr.mxu0 0.0
    %812 = vmatpush1.msra.mxu0 %v769
    %813 = vmatprep.subr.mxu0 0.0
    %814 = vmatpush1.msra.mxu0 %v770
    %815 = vmatprep.subr.mxu0 0.0
    %816 = vmatpush1.msra.mxu0 %v771
    %817 = vmatprep.subr.mxu0 0.0
    %818 = vmatpush1.msra.mxu0 %v772
    %819 = vmatprep.subr.mxu0 0.0
    %820 = vmatpush1.msra.mxu0 %v773
    %821 = vmatprep.subr.mxu0 0.0
    %822 = vmatpush1.msra.mxu0 %v774
    %823 = vmatprep.subr.mxu0 0.0
    %824 = vmatpush1.msra.mxu0 %v775
    %825 = vmatprep.subr.mxu0 0.0
    %826 = vmatpush1.msra.mxu0 %v776
    %827 = vmatprep.subr.mxu0 0.0
    %828 = vmatpush1.msra.mxu0 %v777
    %829 = vmatprep.subr.mxu0 0.0
    %830 = vmatpush1.msra.mxu0 %v778
    %831 = vmatprep.subr.mxu0 0.0
    %832 = vmatpush1.msra.mxu0 %v779
    %833 = vmatprep.subr.mxu0 0.0
    %834 = vmatpush1.msra.mxu0 %v780
    %835 = vmatprep.subr.mxu0 0.0
    %836 = vmatpush1.msra.mxu0 %v781
    %837 = vmatprep.subr.mxu0 0.0
    %838 = vmatpush1.msra.mxu0 %v782
    %839 = vmatprep.subr.mxu0 0.0
    %840 = vmatpush1.msra.mxu0 %v783
    %841 = vmatprep.subr.mxu0 0.0
    %842 = vmatpush1.msra.mxu0 %v784
    %843 = vmatprep.subr.mxu0 0.0
    %844 = vmatpush1.msra.mxu0 %v785
    %845 = vmatprep.subr.mxu0 0.0
    %846 = vmatpush1.msra.mxu0 %v786
    %847 = vmatprep.subr.mxu0 0.0
    %848 = vmatpush1.msra.mxu0 %v787
    %849 = vmatprep.subr.mxu0 0.0
    %850 = vmatpush1.msra.mxu0 %v788
    %851 = vmatprep.subr.mxu0 0.0
    %852 = vmatpush1.msra.mxu0 %v789
    %853 = vmatprep.subr.mxu0 0.0
    %854 = vmatpush1.msra.mxu0 %v790
    %855 = vmatprep.subr.mxu0 0.0
    %856 = vmatpush1.msra.mxu0 %v791
    %857 = vmatprep.subr.mxu0 0.0
    %858 = vmatpush1.msra.mxu0 %v792
    %859 = vmatprep.subr.mxu0 0.0
    %860 = vmatpush1.msra.mxu0 %v793
    %861 = vmatprep.subr.mxu0 0.0
    %862 = vmatpush1.msra.mxu0 %v794
    %863 = vmatprep.subr.mxu0 0.0
    %864 = vmatpush1.msra.mxu0 %v795
    %865 = vmatprep.subr.mxu0 0.0
    %866 = vmatpush1.msra.mxu0 %v796
    %867 = vmatprep.subr.mxu0 0.0
    %868 = vmatpush1.msra.mxu0 %v797
    %869 = vmatprep.mubr.f32.mxu0 %v765
    %870 = vmatmul.mubr.f32.gmra.mrb[0].mxu0 %v764
    %v871 = vpop.f32.mrb[0].mxu0
    %v872 = vadd.f32 %v803, %v871
    %v873 = vpop.f32.mrb[0].mxu0
    %874 = vdwg.mxu0
    %876 = vrot.lane.b32.xlu0 %v477, 4
    %v877 = vpop.permute.xlu0 %876
    %880 = vrot.lane.b32.xlu0 %v481, 4
    %v881 = vpop.permute.xlu0 %880
    %884 = vrot.lane.b32.xlu0 %v872, 12
    %v885 = vpop.permute.xlu0 %884
    %vm887 = vcmask 31744
    %v888 = vsel %vm887, %v491, %v877
    %vm889 = vcmask 64512
    %v890 = vsel %vm889, %v888, %v881
    %vm891 = vcmask 97280
    %v892 = vsel %vm891, %v890, %v885
    %vm893 = vcmask 105472
    %v894 = vsel %vm893, %v892, 0.0
    %895 = vst [vmem:[%s13] sm:$0xff] %v894
    // Predicated region
    $region70: #{actor_critic_forward.1} parent=1 // pred_check
      _
    $region71: #{actor_critic_forward.1} parent=1 // pred_check_branch
      %897 = sbr.rel (0) target = $region73
    $region72: #{actor_critic_forward.1} parent=1 // pred_region
      _
    $region73: #{actor_critic_forward.1} parent=1 // pred_fallthru
      _
    // Predicated region
    $region74: #{actor_critic_forward.1} parent=1 // pred_check
      _
    $region75: #{actor_critic_forward.1} parent=1 // pred_check_branch
      %899 = sbr.rel (0) target = $region77
    $region76: #{actor_critic_forward.1} parent=1 // pred_region
      _
    $region77: #{actor_critic_forward.1} parent=1 // pred_fallthru
      _
    %900 = vsyncpa [#allocation4], 1
    %901 = vsyncpa [#allocation6], 1
    %902 = vsyncpa [#allocation9], 1

</llo_original>
